<compile_context>
chip_gen: v7x
topology: tpu7x:2x2x1
jax: 0.10.0
libtpu: 0.0.40
codegen_flags: <defaults>
</compile_context>

<pallas_src>
import jax
import jax.numpy as jnp
import numpy as np
from jax.experimental import pallas as pl
from jax.experimental.pallas import tpu as pltpu

IN_F = 8      # dense_in input features
K = 64        # gumbel / dense_in output features
OUT_F = 8     # dense_out output features
TAU = 0.5


def gumbo_kernel(x_ref, g_ref, win_ref, bin_ref, wout_ref, bout_ref, o_ref):
    """Whole forward fused: dense_in -> hard gumbel-softmax -> dense_out -> softmax.

    Shapes (all resident in VMEM):
      x_ref    (N, IN_F)     flattened batch*seq rows
      g_ref    (N, K)        pre-sampled Gumbel(0,1) noise
      win_ref  (IN_F, K)     W_in^T
      bin_ref  (1, K)        b_in
      wout_ref (K, OUT_F)    W_out^T
      bout_ref (1, OUT_F)    b_out
      o_ref    (N, OUT_F)
    """
    # dense_in for all rows in one matmul
    logits = (jnp.dot(x_ref[...], win_ref[...],
                      preferred_element_type=jnp.float32) + bin_ref[...])

    # gumbel-softmax logits; softmax is monotonic, so argmax of the soft probs
    # equals argmax of y — no need to materialize the soft distribution for the
    # hard forward value.
    y = (logits + g_ref[...]) * jnp.float32(1.0 / TAU)           # (N, K)

    # one_hot(argmax(y)) with first-max tie-breaking (matches torch.argmax):
    # lane-iota + min-reduce over lanes that attain the row max.
    m = jnp.max(y, axis=-1, keepdims=True)                        # (N, 1)
    lane = jax.lax.broadcasted_iota(jnp.int32, y.shape, 1)        # (N, K)
    first = jnp.min(jnp.where(y == m, lane, K), axis=-1, keepdims=True)
    hard = (lane == first).astype(jnp.float32)                    # (N, K)

    # dense_out + softmax over the last dim (== dim=2 of (B, S, 8))
    z = (jnp.dot(hard, wout_ref[...],
                 preferred_element_type=jnp.float32) + bout_ref[...])
    z = z - jnp.max(z, axis=-1, keepdims=True)
    e = jnp.exp(z)
    o_ref[...] = e / jnp.sum(e, axis=-1, keepdims=True)


def temp_layer_h_gumbo_pallas(x, gumbel_noise, w_in, b_in, w_out, b_out):
    """x: (B, S, 8) f32; gumbel_noise: (B, S, K) f32. Returns (B, S, 8) f32."""
    B, S, I = x.shape
    assert I == IN_F
    N = B * S

    x2 = x.reshape(N, IN_F)                    # contiguous reshape (free)
    g2 = gumbel_noise.reshape(N, K)
    win_t = jnp.transpose(w_in, (1, 0))        # (IN_F, K)  tiny, one-time
    wout_t = jnp.transpose(w_out, (1, 0))      # (K, OUT_F)
    bin2 = b_in.reshape(1, K)
    bout2 = b_out.reshape(1, OUT_F)

    vmem_spec = pl.BlockSpec(memory_space=pltpu.MemorySpace.VMEM)
    out2 = pl.pallas_call(
        gumbo_kernel,
        out_shape=jax.ShapeDtypeStruct((N, OUT_F), jnp.float32),
        in_specs=[vmem_spec] * 6,
        out_specs=vmem_spec,
    )(x2, g2, win_t, bin2, wout_t, bout2)

    return out2.reshape(B, S, OUT_F)


def gumbo_reference(x, gumbel_noise, w_in, b_in, w_out, b_out):
    """Pure-JAX reference mirroring the PyTorch forward math."""
    logits = jnp.einsum('bsi,ki->bsk', x, w_in) + b_in
    y = (logits + gumbel_noise) / TAU
    hard = jax.nn.one_hot(jnp.argmax(y, axis=-1), K, dtype=jnp.float32)
    z = jnp.einsum('bsk,ok->bso', hard, w_out) + b_out
    return jax.nn.softmax(z, axis=2)


if __name__ == "__main__":
    key = jax.random.PRNGKey(0)
    kx, kg, k1, k2, k3, k4 = jax.random.split(key, 6)

    B, S = 2, 8
    x = jax.random.normal(kx, (B, S, IN_F), dtype=jnp.float32)
    gumbel_noise = jax.random.gumbel(kg, (B, S, K), dtype=jnp.float32)

    bound_in = 1.0 / np.sqrt(IN_F)             # PyTorch Linear default init range
    bound_out = 1.0 / np.sqrt(K)
    w_in = jax.random.uniform(k1, (K, IN_F), jnp.float32, -bound_in, bound_in)
    b_in = jax.random.uniform(k2, (K,), jnp.float32, -bound_in, bound_in)
    w_out = jax.random.uniform(k3, (OUT_F, K), jnp.float32, -bound_out, bound_out)
    b_out = jax.random.uniform(k4, (OUT_F,), jnp.float32, -bound_out, bound_out)

    out = temp_layer_h_gumbo_pallas(x, gumbel_noise, w_in, b_in, w_out, b_out)
    out = jax.block_until_ready(out)

    ref = gumbo_reference(x, gumbel_noise, w_in, b_in, w_out, b_out)
    np.testing.assert_allclose(np.asarray(out), np.asarray(ref),
                               rtol=1e-5, atol=1e-5)
    assert out.shape == (B, S, OUT_F)
    np.testing.assert_allclose(np.asarray(out).sum(-1), 1.0, rtol=1e-5, atol=1e-5)
    print("KERNEL_OK")
</pallas_src>

<mosaic_0001>
module attributes {stable_mosaic.version = 11 : i64} {
  func.func @gumbo_kernel(%arg0: memref<16x8xf32, #tpu.memory_space<vmem>>, %arg1: memref<16x64xf32, #tpu.memory_space<vmem>>, %arg2: memref<8x64xf32, #tpu.memory_space<vmem>>, %arg3: memref<1x64xf32, #tpu.memory_space<vmem>>, %arg4: memref<64x8xf32, #tpu.memory_space<vmem>>, %arg5: memref<1x8xf32, #tpu.memory_space<vmem>>, %arg6: memref<16x8xf32, #tpu.memory_space<vmem>>) attributes {dimension_semantics = [], scalar_prefetch = 0 : i64, scratch_operands = 0 : i64, tpu.core_type = #tpu.core_type<tc>} {
    %c0 = arith.constant 0 : index
    %c0_0 = arith.constant 0 : index
    %0 = vector.load %arg0[%c0, %c0_0] : memref<16x8xf32, #tpu.memory_space<vmem>>, vector<16x8xf32>
    %c0_1 = arith.constant 0 : index
    %c0_2 = arith.constant 0 : index
    %1 = vector.load %arg2[%c0_1, %c0_2] : memref<8x64xf32, #tpu.memory_space<vmem>>, vector<8x64xf32>
    %cst = arith.constant dense<0.000000e+00> : vector<16x64xf32>
    %2 = tpu.matmul %0, %1, %cst {dimension_numbers = #tpu.dot_dimension_numbers<[1], [0], [0], [1], [0, 0, 1, 1], [], []>} : vector<16x8xf32>, vector<8x64xf32>, vector<16x64xf32> -> vector<16x64xf32>
    %c0_3 = arith.constant 0 : index
    %c0_4 = arith.constant 0 : index
    %3 = vector.load %arg3[%c0_3, %c0_4] : memref<1x64xf32, #tpu.memory_space<vmem>>, vector<1x64xf32>
    %4 = vector.broadcast %3 : vector<1x64xf32> to vector<16x64xf32>
    %5 = arith.addf %2, %4 : vector<16x64xf32>
    %c0_5 = arith.constant 0 : index
    %c0_6 = arith.constant 0 : index
    %6 = vector.load %arg1[%c0_5, %c0_6] : memref<16x64xf32, #tpu.memory_space<vmem>>, vector<16x64xf32>
    %7 = arith.addf %5, %6 : vector<16x64xf32>
    %cst_7 = arith.constant 2.000000e+00 : f32
    %8 = vector.broadcast %cst_7 : f32 to vector<16x64xf32>
    %9 = arith.mulf %7, %8 : vector<16x64xf32>
    %cst_8 = arith.constant dense<0xFF800000> : vector<16xf32>
    %10 = vector.multi_reduction <maximumf>, %9, %cst_8 [1] : vector<16x64xf32> to vector<16xf32>
    %11 = vector.shape_cast %10 : vector<16xf32> to vector<16x1xf32>
    %12 = tpu.iota {dimensions = array<i32: 1>} : vector<16x64xi32>
    %13 = vector.broadcast %11 : vector<16x1xf32> to vector<16x64xf32>
    %14 = arith.cmpf oeq, %9, %13 : vector<16x64xf32>
    %c64_i32 = arith.constant 64 : i32
    %15 = vector.broadcast %c64_i32 : i32 to vector<16x64xi32>
    %16 = arith.select %14, %12, %15 : vector<16x64xi1>, vector<16x64xi32>
    %cst_9 = arith.constant dense<2147483647> : vector<16xi32>
    %17 = vector.multi_reduction <minsi>, %16, %cst_9 [1] : vector<16x64xi32> to vector<16xi32>
    %18 = vector.shape_cast %17 : vector<16xi32> to vector<16x1xi32>
    %19 = vector.broadcast %18 : vector<16x1xi32> to vector<16x64xi32>
    %20 = arith.cmpi eq, %12, %19 : vector<16x64xi32>
    %21 = arith.extui %20 : vector<16x64xi1> to vector<16x64xi32>
    %22 = arith.sitofp %21 : vector<16x64xi32> to vector<16x64xf32>
    %c0_10 = arith.constant 0 : index
    %c0_11 = arith.constant 0 : index
    %23 = vector.load %arg4[%c0_10, %c0_11] : memref<64x8xf32, #tpu.memory_space<vmem>>, vector<64x8xf32>
    %cst_12 = arith.constant dense<0.000000e+00> : vector<16x8xf32>
    %24 = tpu.matmul %22, %23, %cst_12 {dimension_numbers = #tpu.dot_dimension_numbers<[1], [0], [0], [1], [0, 0, 1, 1], [], []>} : vector<16x64xf32>, vector<64x8xf32>, vector<16x8xf32> -> vector<16x8xf32>
    %c0_13 = arith.constant 0 : index
    %c0_14 = arith.constant 0 : index
    %25 = vector.load %arg5[%c0_13, %c0_14] : memref<1x8xf32, #tpu.memory_space<vmem>>, vector<1x8xf32>
    %26 = vector.broadcast %25 : vector<1x8xf32> to vector<16x8xf32>
    %27 = arith.addf %24, %26 : vector<16x8xf32>
    %cst_15 = arith.constant dense<0xFF800000> : vector<16xf32>
    %28 = vector.multi_reduction <maximumf>, %27, %cst_15 [1] : vector<16x8xf32> to vector<16xf32>
    %29 = vector.shape_cast %28 : vector<16xf32> to vector<16x1xf32>
    %30 = vector.broadcast %29 : vector<16x1xf32> to vector<16x8xf32>
    %31 = arith.subf %27, %30 : vector<16x8xf32>
    %32 = math.exp %31 : vector<16x8xf32>
    %cst_16 = arith.constant dense<0.000000e+00> : vector<16xf32>
    %33 = vector.multi_reduction <add>, %32, %cst_16 [1] : vector<16x8xf32> to vector<16xf32>
    %34 = vector.shape_cast %33 : vector<16xf32> to vector<16x1xf32>
    %35 = vector.broadcast %34 : vector<16x1xf32> to vector<16x8xf32>
    %36 = arith.divf %32, %35 : vector<16x8xf32>
    %c0_17 = arith.constant 0 : index
    %c0_18 = arith.constant 0 : index
    %37 = vector.load %arg6[%c0_17, %c0_18] : memref<16x8xf32, #tpu.memory_space<vmem>>, vector<16x8xf32>
    tpu.vector_store %arg6[%c0_17, %c0_18], %36 {strides = array<i32>} : memref<16x8xf32, #tpu.memory_space<vmem>>, vector<16x8xf32>,
    return
  }
}

</mosaic_0001>

<llo_original>
// kernel: tpu_custom_call.1
$region0: #{tpu_custom_call.1}
  #allocation0 [shape = 'u32[]', space=smem, size = 0x4, offset = 0x4, fixed_abs, tag = 'smem constant byte address 0x4 - core index']
  #allocation1 [shape = 'u32[144,128]{1,0:T(1,128)}', space=vmem, size = 0x12000, scoped, tag = 'internal scratch']
  %s0 = inlined_call_operand.vmem [shape: f32[16,8], index: 0, kind: input, shape index: {}]
  %s1 = inlined_call_operand.vmem [shape: f32[16,64], index: 1, kind: input, shape index: {}]
  %s2 = inlined_call_operand.vmem [shape: f32[8,64], index: 2, kind: input, shape index: {}]
  %s3 = inlined_call_operand.vmem [shape: f32[1,64], index: 3, kind: input, shape index: {}]
  %s4 = inlined_call_operand.vmem [shape: f32[64,8], index: 4, kind: input, shape index: {}]
  %s5 = inlined_call_operand.vmem [shape: f32[1,8], index: 5, kind: input, shape index: {}]
  %s6 = inlined_call_operand.vmem [shape: f32[16,8], index: 6, kind: output, shape index: {}]
  %s7 = sld [smem:[#allocation0]]
  $region34: #{tpu_custom_call.1} parent=0
    _
  %s9 = ssub.s32 1, %s7
  %s10 = scalar_select 0, %s9, %s7
  // Predicated region
  $region2: #{tpu_custom_call.1} parent=0 // pred_check
    _
  $region3: #{tpu_custom_call.1} parent=0 // pred_check_branch
    %12 = sbr.rel (0) target = $region5
  $region4: #{tpu_custom_call.1} parent=0 // pred_region
    _
  $region5: #{tpu_custom_call.1} parent=0 // pred_fallthru
    _
  // Predicated region
  $region6: #{tpu_custom_call.1} parent=0 // pred_check
    _
  $region7: #{tpu_custom_call.1} parent=0 // pred_check_branch
    %14 = sbr.rel (0) target = $region9
  $region8: #{tpu_custom_call.1} parent=0 // pred_region
    _
  $region9: #{tpu_custom_call.1} parent=0 // pred_fallthru
    _
  // Predicated region
  $region10: #{tpu_custom_call.1} parent=0 // pred_check
    _
  $region11: #{tpu_custom_call.1} parent=0 // pred_check_branch
    %16 = sbr.rel (0) target = $region13
  $region12: #{tpu_custom_call.1} parent=0 // pred_region
    _
  $region13: #{tpu_custom_call.1} parent=0 // pred_fallthru
    _
  // Predicated region
  $region14: #{tpu_custom_call.1} parent=0 // pred_check
    _
  $region15: #{tpu_custom_call.1} parent=0 // pred_check_branch
    %18 = sbr.rel (0) target = $region17
  $region16: #{tpu_custom_call.1} parent=0 // pred_region
    _
  $region17: #{tpu_custom_call.1} parent=0 // pred_fallthru
    _
  // Predicated region
  $region18: #{tpu_custom_call.1} parent=0 // pred_check
    _
  $region19: #{tpu_custom_call.1} parent=0 // pred_check_branch
    %20 = sbr.rel (0) target = $region21
  $region20: #{tpu_custom_call.1} parent=0 // pred_region
    _
  $region21: #{tpu_custom_call.1} parent=0 // pred_fallthru
    _
  // Predicated region
  $region22: #{tpu_custom_call.1} parent=0 // pred_check
    _
  $region23: #{tpu_custom_call.1} parent=0 // pred_check_branch
    %22 = sbr.rel (0) target = $region25
  $region24: #{tpu_custom_call.1} parent=0 // pred_region
    _
  $region25: #{tpu_custom_call.1} parent=0 // pred_fallthru
    _
  %v23 = vld [vmem:[%s0] sm:$0xff]
  %v24 = vld [vmem:[%s0 + $0x8] sm:$0xff]
  %v25 = vld [vmem:[%s2] sm:$0xff]
  %v26 = vld [vmem:[%s3] sm:$0x1]
  %v28 = vlaneseq
  %v29 = vshrl.u32 %v28, 7
  %v30 = vsub.s32 0, %v29
  %v31 = vrot.slane %v26, %v30
  %vm33 = vcmask 64512
  %v35 = vsel %vm33, %v23, 0
  %v38 = vsel %vm33, %v24, 0
  %40 = vmatprep.subr.mxu0 0.0
  %41 = vmatpush1.msra.mxu0 %v25
  %42 = vmatprep.subr.mxu0 0.0
  %43 = vmatpush1.msra.mxu0 0.0
  %44 = vmatprep.subr.mxu0 0.0
  %45 = vmatpush1.msra.mxu0 0.0
  %46 = vmatprep.subr.mxu0 0.0
  %47 = vmatpush1.msra.mxu0 0.0
  %48 = vmatprep.subr.mxu0 0.0
  %49 = vmatpush1.msra.mxu0 0.0
  %50 = vmatprep.subr.mxu0 0.0
  %51 = vmatpush1.msra.mxu0 0.0
  %52 = vmatprep.subr.mxu0 0.0
  %53 = vmatpush1.msra.mxu0 0.0
  %54 = vmatprep.subr.mxu0 0.0
  %55 = vmatpush1.msra.mxu0 0.0
  %56 = vmatprep.subr.mxu0 0.0
  %57 = vmatpush1.msra.mxu0 0.0
  %58 = vmatprep.subr.mxu0 0.0
  %59 = vmatpush1.msra.mxu0 0.0
  %60 = vmatprep.subr.mxu0 0.0
  %61 = vmatpush1.msra.mxu0 0.0
  %62 = vmatprep.subr.mxu0 0.0
  %63 = vmatpush1.msra.mxu0 0.0
  %64 = vmatprep.subr.mxu0 0.0
  %65 = vmatpush1.msra.mxu0 0.0
  %66 = vmatprep.subr.mxu0 0.0
  %67 = vmatpush1.msra.mxu0 0.0
  %68 = vmatprep.subr.mxu0 0.0
  %69 = vmatpush1.msra.mxu0 0.0
  %70 = vmatprep.subr.mxu0 0.0
  %71 = vmatpush1.msra.mxu0 0.0
  %72 = vmatprep.subr.mxu0 0.0
  %73 = vmatpush1.msra.mxu0 0.0
  %74 = vmatprep.subr.mxu0 0.0
  %75 = vmatpush1.msra.mxu0 0.0
  %76 = vmatprep.subr.mxu0 0.0
  %77 = vmatpush1.msra.mxu0 0.0
  %78 = vmatprep.subr.mxu0 0.0
  %79 = vmatpush1.msra.mxu0 0.0
  %80 = vmatprep.subr.mxu0 0.0
  %81 = vmatpush1.msra.mxu0 0.0
  %82 = vmatprep.subr.mxu0 0.0
  %83 = vmatpush1.msra.mxu0 0.0
  %84 = vmatprep.subr.mxu0 0.0
  %85 = vmatpush1.msra.mxu0 0.0
  %86 = vmatprep.subr.mxu0 0.0
  %87 = vmatpush1.msra.mxu0 0.0
  %88 = vmatprep.subr.mxu0 0.0
  %89 = vmatpush1.msra.mxu0 0.0
  %90 = vmatprep.subr.mxu0 0.0
  %91 = vmatpush1.msra.mxu0 0.0
  %92 = vmatprep.subr.mxu0 0.0
  %93 = vmatpush1.msra.mxu0 0.0
  %94 = vmatprep.subr.mxu0 0.0
  %95 = vmatpush1.msra.mxu0 0.0
  %96 = vmatprep.subr.mxu0 0.0
  %97 = vmatpush1.msra.mxu0 0.0
  %98 = vmatprep.subr.mxu0 0.0
  %99 = vmatpush1.msra.mxu0 0.0
  %100 = vmatprep.subr.mxu0 0.0
  %101 = vmatpush1.msra.mxu0 0.0
  %102 = vmatprep.subr.mxu0 0.0
  %103 = vmatpush1.msra.mxu0 0.0
  %104 = vmatprep.mubr.f32.mxu0 0.0
  %105 = vmatmul.mubr.f32.gmra.mrb[0].mxu0 %v35
  %v106 = vpop.f32.mrb[0].mxu0
  %v107 = vadd.f32 %v31, %v106
  %v108 = vpop.f32.mrb[0].mxu0
  %109 = vmatprep.mubr.f32.mxu0 0.0
  %110 = vmatmul.mubr.f32.gmra.mrb[0].mxu0 %v38
  %v111 = vpop.f32.mrb[0].mxu0
  %v112 = vadd.f32 %v31, %v111
  %v113 = vpop.f32.mrb[0].mxu0
  %114 = vdwg.mxu0
  %v115 = vld [vmem:[%s1] sm:$0xff]
  %v116 = vld [vmem:[%s1 + $0x8] sm:$0xff]
  %v117 = vadd.f32 %v107, %v115
  %v118 = vadd.f32 %v112, %v116
  %v119 = vmul.f32 %v117, 2.0
  %v120 = vmul.f32 %v118, 2.0
  %vm121 = vcmask 523264
  %v122 = vsel %vm121, %v119, -inf
  %123 = vmax.xlane.f32.xlu0 %v122
  %v124 = vpop.xlane.xlu0 %123
  %v125 = vsel %vm121, %v120, -inf
  %126 = vmax.xlane.f32.xlu0 %v125
  %v127 = vpop.xlane.xlu0 %126
  %v128 = vlaneseq
  %v129 = vand.u32 %v128, 127
  %vm130 = vcmp.eq.f32.partialorder %v119, %v124
  %vm131 = vcmp.eq.f32.partialorder %v120, %v127
  %v132 = vsel %vm130, %v129, 64
  %v133 = vsel %vm131, %v129, 64
  %v134 = vsel %vm121, %v132, 2147483647
  %v135 = vand.u32 %v134, 65535
  %v136 = vshra.s32 %v134, 16
  %v137 = vcvt.s32.f32 %v135
  %v138 = vcvt.s32.f32 %v136
  %139 = vmin.xlane.f32.xlu0 %v138
  %v140 = vpop.xlane.xlu0 %139
  %vm141 = vcmp.eq.f32.partialorder %v138, %v140
  %v142 = vsel %vm141, %v137, inf
  %143 = vmin.xlane.f32.xlu0 %v142
  %v144 = vpop.xlane.xlu0 %143
  %v145 = vcvt.f32.s32 %v144
  %v146 = vcvt.f32.s32 %v140
  %v147 = vshll.u32 %v146, 16
  %v148 = vadd.s32 %v147, %v145
  %v149 = vsel %vm121, %v133, 2147483647
  %v150 = vand.u32 %v149, 65535
  %v151 = vshra.s32 %v149, 16
  %v152 = vcvt.s32.f32 %v150
  %v153 = vcvt.s32.f32 %v151
  %154 = vmin.xlane.f32.xlu0 %v153
  %v155 = vpop.xlane.xlu0 %154
  %vm156 = vcmp.eq.f32.partialorder %v153, %v155
  %v157 = vsel %vm156, %v152, inf
  %158 = vmin.xlane.f32.xlu0 %v157
  %v159 = vpop.xlane.xlu0 %158
  %v160 = vcvt.f32.s32 %v159
  %v161 = vcvt.f32.s32 %v155
  %v162 = vshll.u32 %v161, 16
  %v163 = vadd.s32 %v162, %v160
  %vm164 = vcmp.eq.s32.totalorder %v129, %v148
  %vm165 = vcmp.eq.s32.totalorder %v129, %v163
  %v166 = vsel %vm164, 1, 0
  %v167 = vsel %vm165, 1, 0
  %v168 = vcvt.s32.f32 %v166
  %v169 = vcvt.s32.f32 %v167
  %v170 = vld [vmem:[%s4] sm:$0xff]
  %v171 = vld [vmem:[%s4 + $0x8] sm:$0xff]
  %v172 = vld [vmem:[%s4 + $0x10] sm:$0xff]
  %v173 = vld [vmem:[%s4 + $0x18] sm:$0xff]
  %v174 = vld [vmem:[%s4 + $0x20] sm:$0xff]
  %v175 = vld [vmem:[%s4 + $0x28] sm:$0xff]
  %v176 = vld [vmem:[%s4 + $0x30] sm:$0xff]
  %v177 = vld [vmem:[%s4 + $0x38] sm:$0xff]
  %v178 = vld [vmem:[%s5] sm:$0x1]
  %v180 = vlaneseq
  %v181 = vshrl.u32 %v180, 7
  %v182 = vsub.s32 0, %v181
  %v183 = vrot.slane %v178, %v182
  %v186 = vsel %vm121, %v168, 0
  %v189 = vsel %vm121, %v169, 0
  %191 = vmatprep.subr.mxu0 0.0
  %192 = vmatpush1.msra.mxu0 %v170
  %193 = vmatprep.subr.mxu0 0.0
  %194 = vmatpush1.msra.mxu0 %v171
  %195 = vmatprep.subr.mxu0 0.0
  %196 = vmatpush1.msra.mxu0 %v172
  %197 = vmatprep.subr.mxu0 0.0
  %198 = vmatpush1.msra.mxu0 %v173
  %199 = vmatprep.subr.mxu0 0.0
  %200 = vmatpush1.msra.mxu0 %v174
  %201 = vmatprep.subr.mxu0 0.0
  %202 = vmatpush1.msra.mxu0 %v175
  %203 = vmatprep.subr.mxu0 0.0
  %204 = vmatpush1.msra.mxu0 %v176
  %205 = vmatprep.subr.mxu0 0.0
  %206 = vmatpush1.msra.mxu0 %v177
  %207 = vmatprep.subr.mxu0 0.0
  %208 = vmatpush1.msra.mxu0 0.0
  %209 = vmatprep.subr.mxu0 0.0
  %210 = vmatpush1.msra.mxu0 0.0
  %211 = vmatprep.subr.mxu0 0.0
  %212 = vmatpush1.msra.mxu0 0.0
  %213 = vmatprep.subr.mxu0 0.0
  %214 = vmatpush1.msra.mxu0 0.0
  %215 = vmatprep.subr.mxu0 0.0
  %216 = vmatpush1.msra.mxu0 0.0
  %217 = vmatprep.subr.mxu0 0.0
  %218 = vmatpush1.msra.mxu0 0.0
  %219 = vmatprep.subr.mxu0 0.0
  %220 = vmatpush1.msra.mxu0 0.0
  %221 = vmatprep.subr.mxu0 0.0
  %222 = vmatpush1.msra.mxu0 0.0
  %223 = vmatprep.subr.mxu0 0.0
  %224 = vmatpush1.msra.mxu0 0.0
  %225 = vmatprep.subr.mxu0 0.0
  %226 = vmatpush1.msra.mxu0 0.0
  %227 = vmatprep.subr.mxu0 0.0
  %228 = vmatpush1.msra.mxu0 0.0
  %229 = vmatprep.subr.mxu0 0.0
  %230 = vmatpush1.msra.mxu0 0.0
  %231 = vmatprep.subr.mxu0 0.0
  %232 = vmatpush1.msra.mxu0 0.0
  %233 = vmatprep.subr.mxu0 0.0
  %234 = vmatpush1.msra.mxu0 0.0
  %235 = vmatprep.subr.mxu0 0.0
  %236 = vmatpush1.msra.mxu0 0.0
  %237 = vmatprep.subr.mxu0 0.0
  %238 = vmatpush1.msra.mxu0 0.0
  %239 = vmatprep.subr.mxu0 0.0
  %240 = vmatpush1.msra.mxu0 0.0
  %241 = vmatprep.subr.mxu0 0.0
  %242 = vmatpush1.msra.mxu0 0.0
  %243 = vmatprep.subr.mxu0 0.0
  %244 = vmatpush1.msra.mxu0 0.0
  %245 = vmatprep.subr.mxu0 0.0
  %246 = vmatpush1.msra.mxu0 0.0
  %247 = vmatprep.subr.mxu0 0.0
  %248 = vmatpush1.msra.mxu0 0.0
  %249 = vmatprep.subr.mxu0 0.0
  %250 = vmatpush1.msra.mxu0 0.0
  %251 = vmatprep.subr.mxu0 0.0
  %252 = vmatpush1.msra.mxu0 0.0
  %253 = vmatprep.subr.mxu0 0.0
  %254 = vmatpush1.msra.mxu0 0.0
  %255 = vmatprep.mubr.f32.mxu0 0.0
  %256 = vmatmul.mubr.f32.gmra.mrb[0].mxu0 %v186
  %v257 = vpop.f32.mrb[0].mxu0
  %v258 = vadd.f32 %v183, %v257
  %v259 = vpop.f32.mrb[0].mxu0
  %260 = vmatprep.mubr.f32.mxu0 0.0
  %261 = vmatmul.mubr.f32.gmra.mrb[0].mxu0 %v189
  %v262 = vpop.f32.mrb[0].mxu0
  %v263 = vadd.f32 %v183, %v262
  %v264 = vpop.f32.mrb[0].mxu0
  %265 = vdwg.mxu0
  %v266 = vsel %vm33, %v258, -inf
  %267 = vmax.xlane.f32.xlu0 %v266
  %v268 = vpop.xlane.xlu0 %267
  %v269 = vsel %vm33, %v263, -inf
  %270 = vmax.xlane.f32.xlu0 %v269
  %v271 = vpop.xlane.xlu0 %270
  %v272 = vsub.f32 %v258, %v268
  %v273 = vsub.f32 %v263, %v271
  %v274 = vmul.f32 %v272, 1.442695
  %v275 = vpow.pop %v274
  %v276 = vmul.f32 %v273, 1.442695
  %v277 = vpow.pop %v276
  %v278 = vsel %vm33, %v275, 0.0
  %279 = vadd.xlane.f32.xlu0 %v278
  %v280 = vpop.xlane.xlu0 %279
  %v281 = vsel %vm33, %v277, 0.0
  %282 = vadd.xlane.f32.xlu0 %v281
  %v283 = vpop.xlane.xlu0 %282
  %v284 = vrcp.pop %v280
  %v285 = vmul.f32 %v275, %v284
  %v286 = vrcp.pop %v283
  %v287 = vmul.f32 %v277, %v286
  %288 = vst.msk [vmem:[%s6] sm:$0xff] %vm33, %v285
  %289 = vst.msk [vmem:[%s6 + $0x8] sm:$0xff] %vm33, %v287
  // Predicated region
  $region26: #{tpu_custom_call.1} parent=0 // pred_check
    _
  $region27: #{tpu_custom_call.1} parent=0 // pred_check_branch
    %291 = sbr.rel (0) target = $region29
  $region28: #{tpu_custom_call.1} parent=0 // pred_region
    _
  $region29: #{tpu_custom_call.1} parent=0 // pred_fallthru
    _
  // Predicated region
  $region30: #{tpu_custom_call.1} parent=0 // pred_check
    _
  $region31: #{tpu_custom_call.1} parent=0 // pred_check_branch
    %293 = sbr.rel (0) target = $region33
  $region32: #{tpu_custom_call.1} parent=0 // pred_region
    _
  $region33: #{tpu_custom_call.1} parent=0 // pred_fallthru
    _

</llo_original>
